<compile_context>
chip_gen: v7x
topology: tpu7x:2x2x1
jax: 0.10.0
libtpu: 0.0.40
codegen_flags: <defaults>
</compile_context>

<pallas_src>
import jax
import jax.numpy as jnp
from jax.experimental import pallas as pl
from jax.experimental.pallas import tpu as pltpu

LANES = 128        # lane width (last dim of every vreg)
SUBLANES = 8       # f32 sublane count; accumulator row count
STRIP_ROWS = 256   # rows per in-kernel accumulation strip (128 KiB f32)
EPS = 1e-08


def _round_up(x, m):
    return (x + m - 1) // m * m


def _hw_config():
    """(max_block_rows, n_parallel_cores) for the local TPU generation."""
    kind = ""
    try:
        kind = jax.devices()[0].device_kind.lower()
    except Exception:
        pass
    is_v7 = "v7" in kind
    is_v5e = ("v5 lite" in kind) or ("v5e" in kind) or ("v5litepod" in kind)
    # f32 input buffers: 2 arrays x 2 pipeline buffers x rows x 128 x 4B.
    #   8192 rows -> 16 MiB (fine on v6e/v7x), 4096 rows -> 8 MiB (v5e-safe).
    max_rows = 4096 if is_v5e else 8192
    # v5e / v6e have a single TensorCore: a 2-wide leading axis is just a
    # serial loop plus a possible wasted clamped duplicate block.
    ncores = 2 if is_v7 else 1
    return max_rows, ncores


def _make_kernel(*, total_valid, block_rows, strips, needs_mask, binary_labels):
    """Kernel closure with all static layout parameters baked in."""
    full_rows = total_valid // LANES   # slab rows that are entirely valid
    rem = total_valid % LANES          # valid lanes in row `full_rows`

    def strip_term(p, l):
        if binary_labels:
            # One log per element instead of two (labels guaranteed in {0,1}).
            sel = jnp.where(l >= 0.5, p, 1.0 - p)
            return -jnp.log(sel + EPS)
        log_a = jnp.log(p + EPS)          # log(p + eps)
        log_b = jnp.log(1.0 - p + EPS)    # log(1 - p + eps)
        # -(l*log_a + (1-l)*log_b), refactored to drop one VPU op per element.
        return -(log_b + l * (log_a - log_b))

    def fold(term, size):
        # (size, 128) -> (8, 128): pure vreg-wise VPU adds, no XLU work.
        return term.reshape(size // SUBLANES, SUBLANES, LANES).sum(axis=0)

    def kernel(p_ref, l_ref, out_ref, acc_ref):
        c = pl.program_id(0)
        i = pl.program_id(1)
        n_i = pl.num_programs(1)

        @pl.when(i == 0)
        def _():
            acc_ref[...] = jnp.zeros_like(acc_ref)

        # Unclamped logical block id (int32; would need ~2^31 slab rows to
        # overflow, far beyond realistic tensors).
        g = c * n_i + i

        def accumulate(masked):
            # Static strip loop: aligned static slices, small per-strip
            # working set, acc_ref updated with one vreg add per strip.
            for start, size in strips:
                p = p_ref[pl.ds(start, size), :].astype(jnp.float32)
                l = l_ref[pl.ds(start, size), :].astype(jnp.float32)
                term = strip_term(p, l)
                if masked:
                    row = jax.lax.broadcasted_iota(jnp.int32, (size, LANES), 0)
                    grow = g * block_rows + (start + row)   # global slab row
                    if rem == 0:
                        valid = grow < full_rows
                    else:
                        lane = jax.lax.broadcasted_iota(
                            jnp.int32, (size, LANES), 1)
                        valid = (grow < full_rows) | (
                            (grow == full_rows) & (lane < rem))
                    term = jnp.where(valid, term, 0.0)
                acc_ref[...] += fold(term, size)

        if needs_mask:
            # Interior blocks take the unmasked fast path; only the block
            # containing the tail (or a clamped duplicate block) pays the
            # iota masking.
            fully_valid = (g + 1) * block_rows <= full_rows

            @pl.when(fully_valid)
            def _():
                accumulate(masked=False)

            @pl.when(jnp.logical_not(fully_valid))
            def _():
                accumulate(masked=True)
        else:
            accumulate(masked=False)

        @pl.when(i == n_i - 1)
        def _():
            out_ref[...] = acc_ref[...].reshape(1, SUBLANES, LANES)

    return kernel


def ce_loss_with_oh_2d(inputs, labels, classes=None, *, assume_binary_labels=False):
    """Pallas implementation of CELossWithOH_2D.forward (scalar loss).

    `classes` is kept for API parity with the PyTorch module; it does not
    participate in the forward computation.  `assume_binary_labels=True`
    enables a one-log-per-element fast path valid only for labels in {0,1}.
    """
    assert inputs.shape == labels.shape
    n, c, h, w = inputs.shape
    total = n * c * h * w

    # Flatten into a lane-dense (rows, 128) slab.  Only pad (to a multiple of
    # 8*128 so every block dim stays 8-aligned) when strictly necessary; the
    # common segmentation shapes hit the no-copy path.
    tile_elems = SUBLANES * LANES
    padded_total = _round_up(total, tile_elems)

    def to_slab(x):
        x = jnp.reshape(x, (-1,))                    # free contiguous reshape
        if padded_total != total:
            x = jnp.pad(x, (0, padded_total - total))
        return jnp.reshape(x, (-1, LANES))           # native dtype; cast in-kernel

    p2d = to_slab(inputs)
    l2d = to_slab(labels)
    rows = p2d.shape[0]                              # multiple of 8

    # Static tiling / grid decisions.
    max_rows, ncores_cfg = _hw_config()
    block_rows = min(max_rows, rows)                 # multiple of 8, <= rows
    nblocks = pl.cdiv(rows, block_rows)
    ncores = min(ncores_cfg, nblocks)
    bpc = pl.cdiv(nblocks, ncores)                   # row-blocks per core

    # Static strip layout inside one block (sizes are multiples of 8).
    strips = []
    start = 0
    while start < block_rows:
        size = min(STRIP_ROWS, block_rows - start)
        strips.append((start, size))
        start += size

    # Masking is compiled out entirely when every logical block is fully
    # valid (no padding, no partial last block, no clamped duplicate).
    needs_mask = not (padded_total == total and ncores * bpc * block_rows == rows)

    if ncores * bpc == nblocks:
        idx = lambda cc, ii: (cc * bpc + ii, 0)
    else:
        # Last core has fewer real blocks: clamp the DMA to the final valid
        # block; the duplicated contribution is zeroed by the in-kernel mask.
        idx = lambda cc, ii: (jnp.minimum(cc * bpc + ii, nblocks - 1), 0)

    in_spec = pl.BlockSpec((block_rows, LANES), idx)
    out_spec = pl.BlockSpec((1, SUBLANES, LANES), lambda cc, ii: (cc, 0, 0))

    # Explicit VMEM budget: actual double-buffered input footprint + margin.
    in_bytes = 2 * block_rows * LANES * (p2d.dtype.itemsize + l2d.dtype.itemsize)
    vmem_limit = int(in_bytes + (8 << 20))

    cost = pl.CostEstimate(
        flops=8 * total,
        transcendentals=(1 if assume_binary_labels else 2) * total,
        bytes_accessed=total * (inputs.dtype.itemsize + labels.dtype.itemsize)
        + ncores * SUBLANES * LANES * 4,
    )

    partial = pl.pallas_call(
        _make_kernel(
            total_valid=total,
            block_rows=block_rows,
            strips=tuple(strips),
            needs_mask=needs_mask,
            binary_labels=assume_binary_labels,
        ),
        out_shape=jax.ShapeDtypeStruct((ncores, SUBLANES, LANES), jnp.float32),
        grid_spec=pltpu.PrefetchScalarGridSpec(
            num_scalar_prefetch=0,
            grid=(ncores, bpc),
            in_specs=[in_spec, in_spec],
            out_specs=out_spec,
            scratch_shapes=[pltpu.VMEM((SUBLANES, LANES), jnp.float32)],
        ),
        compiler_params=pltpu.CompilerParams(
            dimension_semantics=("parallel", "arbitrary"),
            vmem_limit_bytes=vmem_limit,
        ),
        cost_estimate=cost,
    )(p2d, l2d)

    # .sum(dim=1) removes the (doubled) channel dim; .mean() is over N*H*W.
    return jnp.sum(partial) / jnp.float32(n * h * w)


def _reference(inputs, labels, eps=EPS):
    """Plain-JAX reference mirroring the PyTorch code line-by-line."""
    labels2 = jnp.concatenate([labels, 1.0 - labels], axis=1)
    logp = jnp.log(jnp.concatenate([inputs, 1.0 - inputs], axis=1) + eps)
    return jnp.mean(jnp.sum(-labels2 * logp, axis=1))


if __name__ == "__main__":
    key = jax.random.PRNGKey(0)

    def make_case(k, shape):
        k1, k2 = jax.random.split(k)
        p = jax.nn.sigmoid(jax.random.normal(k1, shape, jnp.float32))
        l = (jax.random.uniform(k2, shape, jnp.float32) > 0.5).astype(jnp.float32)
        return p, l

    k0, k1, k2 = jax.random.split(key, 3)
    cases = [
        ((2, 4, 16, 16), k0),     # tile-aligned: mask compiled out
        ((1, 3, 5, 7), k1),       # ragged tail: padding + masked path
        ((2, 4, 128, 132), k2),   # multi-strip block with remainder strip
    ]

    for shape, kk in cases:
        p, l = make_case(kk, shape)
        loss = jax.block_until_ready(ce_loss_with_oh_2d(p, l, classes=shape[1]))
        ref = jax.block_until_ready(_reference(p, l))
        assert jnp.allclose(loss, ref, rtol=1e-5, atol=1e-5), (shape, loss, ref)

    # Opt-in one-log fast path (only valid for strictly {0,1} labels).
    p, l = make_case(k0, (2, 4, 16, 16))
    loss_fast = jax.block_until_ready(
        ce_loss_with_oh_2d(p, l, classes=4, assume_binary_labels=True))
    ref = jax.block_until_ready(_reference(p, l))
    assert jnp.allclose(loss_fast, ref, rtol=1e-5, atol=1e-5), (loss_fast, ref)

    print("KERNEL_OK")
</pallas_src>

<mosaic_0001>
module attributes {stable_mosaic.version = 11 : i64} {
  func.func @kernel(%arg0: i32, %arg1: i32, %arg2: memref<16x128xf32, #tpu.memory_space<vmem>>, %arg3: memref<16x128xf32, #tpu.memory_space<vmem>>, %arg4: memref<1x8x128xf32, #tpu.memory_space<vmem>>, %arg5: memref<8x128xf32, #tpu.memory_space<vmem>>) attributes {dimension_semantics = [#tpu.dimension_semantics<parallel>, #tpu.dimension_semantics<arbitrary>], iteration_bounds = array<i64: 1, 1>, scalar_prefetch = 0 : i64, scratch_operands = 1 : i64, tpu.core_type = #tpu.core_type<tc>, window_params = [{transform_indices = @transform_0, window_bounds = array<i64: 16, 128>}, {transform_indices = @transform_1, window_bounds = array<i64: 16, 128>}, {transform_indices = @transform_2, window_bounds = array<i64: 1, 8, 128>}]} {
    %c0_i32 = arith.constant 0 : i32
    %0 = arith.cmpi eq, %arg1, %c0_i32 : i32
    %1 = arith.extui %0 : i1 to i32
    %c0_i32_0 = arith.constant 0 : i32
    %2 = arith.cmpi ne, %1, %c0_i32_0 : i32
    scf.if %2 {
      %cst_14 = arith.constant 0.000000e+00 : f32
      %26 = vector.broadcast %cst_14 : f32 to vector<8x128xf32>
      %c0_15 = arith.constant 0 : index
      %c0_16 = arith.constant 0 : index
      %27 = vector.load %arg5[%c0_15, %c0_16] : memref<8x128xf32, #tpu.memory_space<vmem>>, vector<8x128xf32>
      tpu.vector_store %arg5[%c0_15, %c0_16], %26 {strides = array<i32>} : memref<8x128xf32, #tpu.memory_space<vmem>>, vector<8x128xf32>,
    } else {
    }
    %c0 = arith.constant 0 : index
    %c0_1 = arith.constant 0 : index
    %3 = vector.load %arg2[%c0, %c0_1] : memref<16x128xf32, #tpu.memory_space<vmem>>, vector<16x128xf32>
    %c0_2 = arith.constant 0 : index
    %c0_3 = arith.constant 0 : index
    %4 = vector.load %arg3[%c0_2, %c0_3] : memref<16x128xf32, #tpu.memory_space<vmem>>, vector<16x128xf32>
    %cst = arith.constant 9.99999993E-9 : f32
    %5 = vector.broadcast %cst : f32 to vector<16x128xf32>
    %6 = arith.addf %3, %5 : vector<16x128xf32>
    %7 = math.log %6 : vector<16x128xf32>
    %cst_4 = arith.constant 1.000000e+00 : f32
    %8 = vector.broadcast %cst_4 : f32 to vector<16x128xf32>
    %9 = arith.subf %8, %3 : vector<16x128xf32>
    %cst_5 = arith.constant 9.99999993E-9 : f32
    %10 = vector.broadcast %cst_5 : f32 to vector<16x128xf32>
    %11 = arith.addf %9, %10 : vector<16x128xf32>
    %12 = math.log %11 : vector<16x128xf32>
    %13 = arith.subf %7, %12 : vector<16x128xf32>
    %14 = arith.mulf %4, %13 : vector<16x128xf32>
    %15 = arith.addf %12, %14 : vector<16x128xf32>
    %cst_6 = arith.constant 0.000000e+00 : f32
    %16 = vector.broadcast %cst_6 : f32 to vector<16x128xf32>
    %17 = arith.subf %16, %15 : vector<16x128xf32>
    %c0_7 = arith.constant 0 : index
    %c0_8 = arith.constant 0 : index
    %18 = vector.load %arg5[%c0_7, %c0_8] : memref<8x128xf32, #tpu.memory_space<vmem>>, vector<8x128xf32>
    %19 = vector.shape_cast %17 : vector<16x128xf32> to vector<2x8x128xf32>
    %cst_9 = arith.constant dense<0.000000e+00> : vector<8x128xf32>
    %20 = vector.multi_reduction <add>, %19, %cst_9 [0] : vector<2x8x128xf32> to vector<8x128xf32>
    %21 = arith.addf %18, %20 : vector<8x128xf32>
    %c0_10 = arith.constant 0 : index
    %c0_11 = arith.constant 0 : index
    %22 = vector.load %arg5[%c0_10, %c0_11] : memref<8x128xf32, #tpu.memory_space<vmem>>, vector<8x128xf32>
    tpu.vector_store %arg5[%c0_10, %c0_11], %21 {strides = array<i32>} : memref<8x128xf32, #tpu.memory_space<vmem>>, vector<8x128xf32>,
    %c0_i32_12 = arith.constant 0 : i32
    %23 = arith.cmpi eq, %arg1, %c0_i32_12 : i32
    %24 = arith.extui %23 : i1 to i32
    %c0_i32_13 = arith.constant 0 : i32
    %25 = arith.cmpi ne, %24, %c0_i32_13 : i32
    scf.if %25 {
      %c0_14 = arith.constant 0 : index
      %c0_15 = arith.constant 0 : index
      %26 = vector.load %arg5[%c0_14, %c0_15] : memref<8x128xf32, #tpu.memory_space<vmem>>, vector<8x128xf32>
      %27 = vector.shape_cast %26 : vector<8x128xf32> to vector<1x8x128xf32>
      %c0_16 = arith.constant 0 : index
      %c0_17 = arith.constant 0 : index
      %c0_18 = arith.constant 0 : index
      %28 = vector.load %arg4[%c0_16, %c0_17, %c0_18] : memref<1x8x128xf32, #tpu.memory_space<vmem>>, vector<1x8x128xf32>
      tpu.vector_store %arg4[%c0_16, %c0_17, %c0_18], %27 {strides = array<i32>} : memref<1x8x128xf32, #tpu.memory_space<vmem>>, vector<1x8x128xf32>,
    } else {
    }
    return
  }
  func.func @transform_0(%arg0: i32, %arg1: i32) -> (i32, i32) {
    %c1_i32 = arith.constant 1 : i32
    %0 = arith.muli %arg0, %c1_i32 : i32
    %1 = arith.addi %0, %arg1 : i32
    %c0_i32 = arith.constant 0 : i32
    %c0_i32_0 = arith.constant 0 : i32
    return %1, %c0_i32 : i32, i32
  }
  func.func @transform_1(%arg0: i32, %arg1: i32) -> (i32, i32) {
    %c1_i32 = arith.constant 1 : i32
    %0 = arith.muli %arg0, %c1_i32 : i32
    %1 = arith.addi %0, %arg1 : i32
    %c0_i32 = arith.constant 0 : i32
    %c0_i32_0 = arith.constant 0 : i32
    return %1, %c0_i32 : i32, i32
  }
  func.func @transform_2(%arg0: i32, %arg1: i32) -> (i32, i32, i32) {
    %c0_i32 = arith.constant 0 : i32
    %c0_i32_0 = arith.constant 0 : i32
    %c0_i32_1 = arith.constant 0 : i32
    return %arg0, %c0_i32, %c0_i32_0 : i32, i32, i32
  }
}

</mosaic_0001>

<llo_original>
// kernel: tpu_custom_call.1
$region0: #{tpu_custom_call.1}
  #allocation0 [shape = 'u32[]', space=smem, size = 0x4, offset = 0x4, fixed_abs, tag = 'smem constant byte address 0x4 - core index']
  #allocation1 [shape = 'u32[144,128]{1,0:T(1,128)}', space=vmem, size = 0x12000, scoped, tag = 'internal scratch']
  #allocation2 [shape = 'f32[8,128]{1,0:T(8,128)}', space=vmem, size = 0x1000, scoped, tag = 'scratch operand']
  %s0 = inlined_call_operand.hbm [shape: f32[16,128], index: 0, kind: input, shape index: {}]
  %s1 = inlined_call_operand.hbm [shape: f32[16,128], index: 1, kind: input, shape index: {}]
  %s2 = inlined_call_operand.hbm [shape: f32[1,8,128], index: 2, kind: output, shape index: {}]
  %s3 = sld [smem:[#allocation0]]
  $region34: #{tpu_custom_call.1} parent=0
    _
  %s5 = ssub.s32 1, %s3
  %s6 = scalar_select 0, %s5, %s3
  $region1: #{tpu_custom_call.1} parent=0
    #allocation3 [shape = 'u8[8192]{0}', space=vmem, size = 0x2000, scoped, tag = 'input window, operand 0, single buffered']
    #allocation4 [shape = 's32[1]{0}', space=sflag, size = 0x4, scoped, tag = 'scoped memory for tpu_custom_call.1']
    #allocation5 [shape = 's32[1]{0}', space=sflag, size = 0x4, scoped, tag = 'scoped memory for tpu_custom_call.1']
    #allocation6 [shape = 'u8[8192]{0}', space=vmem, size = 0x2000, scoped, tag = 'input window, operand 1, single buffered']
    #allocation7 [shape = 's32[1]{0}', space=sflag, size = 0x4, scoped, tag = 'scoped memory for tpu_custom_call.1']
    #allocation8 [shape = 'u8[4096]{0}', space=vmem, size = 0x1000, scoped, tag = 'output window, operand 0, single buffered']
    %7 = vsyncpa [#allocation4], 0
    %8 = vsyncpa [#allocation7], 0
    %9 = vsyncpa [#allocation5], 0
    // Predicated region
    $region2: #{tpu_custom_call.1} parent=1 // pred_check
      _
    $region3: #{tpu_custom_call.1} parent=1 // pred_check_branch
      %11 = sbr.rel (0) target = $region5
    $region4: #{tpu_custom_call.1} parent=1 // pred_region
      %s12 = sadd.s32 0, 0
      %s13 = smul.u32 2, %s12
      %s15 = ssub.s32 256, 256
      %16 = vsyncadd [#allocation4], %s15
      %s17 = smul.addr %s13, 128
      %s18 = scalar_lea.hbm %s0, %s17
      %s19 = sshll.u32 [#allocation3], 4
      %s20 = int_to_ptr.vmem [resolvable:$true] %s19
      %25 = dma.hbm_to_vmem [thread:$0]  %s18, 256, %s20, [#allocation4], 128, 128, 8
    $region5: #{tpu_custom_call.1} parent=1 // pred_fallthru
      _
    // Predicated region
    $region6: #{tpu_custom_call.1} parent=1 // pred_check
      _
    $region7: #{tpu_custom_call.1} parent=1 // pred_check_branch
      %27 = sbr.rel (0) target = $region9
    $region8: #{tpu_custom_call.1} parent=1 // pred_region
      %s28 = sadd.s32 0, 0
      %s29 = smul.u32 2, %s28
      %s31 = ssub.s32 256, 256
      %32 = vsyncadd [#allocation7], %s31
      %s33 = smul.addr %s29, 128
      %s34 = scalar_lea.hbm %s1, %s33
      %s35 = sshll.u32 [#allocation6], 4
      %s36 = int_to_ptr.vmem [resolvable:$true] %s35
      %41 = dma.hbm_to_vmem [thread:$0]  %s34, 256, %s36, [#allocation7], 128, 128, 8
    $region9: #{tpu_custom_call.1} parent=1 // pred_fallthru
      _
    // Predicated region
    $region10: #{tpu_custom_call.1} parent=1 // pred_check
      _
    $region11: #{tpu_custom_call.1} parent=1 // pred_check_branch
      %43 = sbr.rel (0) target = $region13
    $region12: #{tpu_custom_call.1} parent=1 // pred_region
      %44 = dma.done [#allocation4], 256
    $region13: #{tpu_custom_call.1} parent=1 // pred_fallthru
      _
    // Predicated region
    $region14: #{tpu_custom_call.1} parent=1 // pred_check
      _
    $region15: #{tpu_custom_call.1} parent=1 // pred_check_branch
      %46 = sbr.rel (0) target = $region17
    $region16: #{tpu_custom_call.1} parent=1 // pred_region
      %47 = dma.done [#allocation7], 256
    $region17: #{tpu_custom_call.1} parent=1 // pred_fallthru
      _
    %s48 = sadd.s32 0, 0
    %s49 = smul.u32 2, %s48
    %s50 = sadd.s32 0, 0
    %s51 = smul.u32 2, %s50
    %p52 = scmp.eq.s32.totalorder 0, 0
    // Predicated region
    $region18: #{tpu_custom_call.1} parent=1 // pred_check
      %p53 = pneg %p52
    $region19: #{tpu_custom_call.1} parent=1 // pred_check_branch
      %55 = sbr.rel (%p53) target = $region21
    $region20: #{tpu_custom_call.1} parent=1 // pred_region
      %56 = vst [vmem:[#allocation2] sm:$0xff] 0.0
    $region21: #{tpu_custom_call.1} parent=1 // pred_fallthru
      _
    %v57 = vld [vmem:[#allocation3] sm:$0xff]
    %v58 = vld [vmem:[#allocation3 + $0x8] sm:$0xff]
    %v59 = vld [vmem:[#allocation6] sm:$0xff]
    %v60 = vld [vmem:[#allocation6 + $0x8] sm:$0xff]
    %v61 = vadd.f32 %v57, 1e-08
    %v62 = vadd.f32 %v58, 1e-08
    %v63 = vlog2.pop %v61
    %v64 = vmul.f32 %v63, 0.6931472
    %v65 = vlog2.pop %v62
    %v66 = vmul.f32 %v65, 0.6931472
    %v67 = vsub.f32 1.0, %v57
    %v68 = vsub.f32 1.0, %v58
    %v69 = vadd.f32 %v67, 1e-08
    %v70 = vadd.f32 %v68, 1e-08
    %v71 = vlog2.pop %v69
    %v72 = vmul.f32 %v71, 0.6931472
    %v73 = vlog2.pop %v70
    %v74 = vmul.f32 %v73, 0.6931472
    %v75 = vsub.f32 %v64, %v72
    %v76 = vsub.f32 %v66, %v74
    %v77 = vmul.f32 %v59, %v75
    %v78 = vmul.f32 %v60, %v76
    %v79 = vadd.f32 %v72, %v77
    %v80 = vadd.f32 %v74, %v78
    %v81 = vsub.f32 0.0, %v79
    %v82 = vsub.f32 0.0, %v80
    %v83 = vld [vmem:[#allocation2] sm:$0xff]
    %v84 = vadd.f32 %v81, %v82
    %v85 = vadd.f32 %v83, %v84
    %86 = vst [vmem:[#allocation2] sm:$0xff] %v85
    // Predicated region
    $region22: #{tpu_custom_call.1} parent=1 // pred_check
      %p87 = pneg %p52
    $region23: #{tpu_custom_call.1} parent=1 // pred_check_branch
      %89 = sbr.rel (%p87) target = $region25
    $region24: #{tpu_custom_call.1} parent=1 // pred_region
      %v90 = vld [vmem:[#allocation2] sm:$0xff]
      %91 = vst [vmem:[#allocation8] sm:$0xff] %v90
    $region25: #{tpu_custom_call.1} parent=1 // pred_fallthru
      _
    // Predicated region
    $region26: #{tpu_custom_call.1} parent=1 // pred_check
      _
    $region27: #{tpu_custom_call.1} parent=1 // pred_check_branch
      %93 = sbr.rel (0) target = $region29
    $region28: #{tpu_custom_call.1} parent=1 // pred_region
      %s95 = ssub.s32 128, 128
      %96 = vsyncadd [#allocation5], %s95
      %s98 = sshll.u32 [#allocation8], 4
      %s99 = int_to_ptr.vmem [resolvable:$true] %s98
      %101 = dma.vmem_to_hbm [thread:$0]  %s99, 128, %s2, [#allocation5]
    $region29: #{tpu_custom_call.1} parent=1 // pred_fallthru
      _
    // Predicated region
    $region30: #{tpu_custom_call.1} parent=1 // pred_check
      _
    $region31: #{tpu_custom_call.1} parent=1 // pred_check_branch
      %103 = sbr.rel (0) target = $region33
    $region32: #{tpu_custom_call.1} parent=1 // pred_region
      %104 = dma.done [#allocation5], 128
    $region33: #{tpu_custom_call.1} parent=1 // pred_fallthru
      _
    %105 = vsyncpa [#allocation4], 1
    %106 = vsyncpa [#allocation7], 1
    %107 = vsyncpa [#allocation5], 1

</llo_original>
